<compile_context>
chip_gen: v6e
topology: v6e:2x2x1
jax: 0.10.0
libtpu: 0.0.40
codegen_flags: <defaults>
</compile_context>

<pallas_src>
import numpy as np
import jax
import jax.numpy as jnp
from jax.experimental import pallas as pl
from jax.experimental.pallas import tpu as pltpu

NEG_SLOPE = 0.05        # LeakyReLU negative slope (module default alpha=0.05)
_NEG_BIG = -1e30        # finite "-inf": masked logits never produce inf*0 NaN


# ----------------------------------------------------------------------------
# Kernel 1: projection.   W_x = x @ W ;  s = W_x @ [a1 | a2] + [bias, 0]
# ----------------------------------------------------------------------------
def proj_kernel(x_ref, w_ref, a_ref, b_ref, wx_ref, s_ref):
    wx = jnp.dot(x_ref[...], w_ref[...], preferred_element_type=jnp.float32)
    wx_ref[...] = wx
    # s[:, 0] = a1 . W_x[i] + bias ,  s[:, 1] = a2 . W_x[i]
    s_ref[...] = (jnp.dot(wx, a_ref[...], preferred_element_type=jnp.float32)
                  + b_ref[...])


# ----------------------------------------------------------------------------
# Kernel 2: row-tiled masked edge-softmax + aggregation.
#   e[i,j] = leakyrelu(s1[i] + s2[j]) ; softmax over existing edges of row i
#   out[i] = sum_j alpha[i,j] * W_x[j]
# Only `out` and the per-row softmax stats leave the kernel (no dense alpha).
# ----------------------------------------------------------------------------
def attn_kernel(s1_ref, s2_ref, mask_ref, wx_ref, out_ref, hsum_ref, rmax_ref):
    e = s1_ref[...] + s2_ref[...]                      # (TM,1)+(1,N) -> (TM,N)
    e = jnp.where(e > 0, e, NEG_SLOPE * e)             # LeakyReLU(0.05)

    edge = mask_ref[...].astype(jnp.float32) > 0.0     # int8 0/1 -> bool
    e = jnp.where(edge, e, _NEG_BIG)                   # mask BEFORE exp (no NaN)

    m = jnp.max(e, axis=1, keepdims=True)              # per-row max (stable)
    h = jnp.where(edge, jnp.exp(e - m), 0.0)           # (TM,N)
    hsum = jnp.sum(h, axis=1, keepdims=True)           # (TM,1)

    rmax_ref[...] = m                                  # softmax stats out
    hsum_ref[...] = hsum

    # NOTE: rows with zero edges get alpha=0 / out=0 here; the PyTorch module
    # would divide by zero (NaN).  The driver guarantees self-loops, so the
    # semantics never actually differ.
    hs = jnp.maximum(hsum, 1e-30)
    inv = pl.reciprocal(hs, approx=True)               # EUP vrcp (free slot)
    inv = inv * (2.0 - hs * inv)                       # one Newton step -> f32
    alpha = h * inv                                    # (TM,N)

    # aggregation: bf16 MXU operands by default, f32 accumulation
    out_ref[...] = jnp.dot(alpha.astype(wx_ref.dtype), wx_ref[...],
                           preferred_element_type=jnp.float32)


# ----------------------------------------------------------------------------
# Wrapper
# ----------------------------------------------------------------------------
def _vmem_limit_bytes():
    """Per-generation scoped-VMEM budget (v5e/v6e: 128 MiB phys, v7x: 64 MiB)."""
    cap = 64 << 20
    try:
        cap = int(getattr(pltpu.get_tpu_info(), "vmem_capacity_bytes", cap))
    except Exception:
        pass
    return int(min(cap * 3 // 4, 96 << 20))            # leave compiler headroom


def _attn_step_bytes(tm, n, h, mxu_bf16):
    mask = 2 * tm * n                       # double-buffered int8 mask slab
    outs = 2 * (tm * h * 4 + 2 * tm * 4)    # double-buffered out + stats
    wx = n * h * (2 if mxu_bf16 else 4)     # resident W_x
    temps = 4 * tm * n * 4                  # live f32 temporaries (e/h/alpha)
    return mask + outs + wx + temps


def gat_layer_pallas(x, w_fc_T, a_w, a_b, mask, src, dst, *,
                     row_tile=128, mxu_bf16=True):
    """x: (N,F), w_fc_T: (F,H), a_w: (1,2H), a_b: (1,), mask: (N,N) 0/1 adjacency.
    Returns (out (N,H), alpha_edges (E,)) matching the PyTorch GATLayer."""
    N, F = x.shape
    H = w_fc_T.shape[1]

    vlim = _vmem_limit_bytes()
    row_tile = min(row_tile, N)
    # cap the row tile against the generation's VMEM (relevant for v7x / big N)
    while row_tile > 32 and _attn_step_bytes(row_tile, N, H, mxu_bf16) > vlim // 2:
        row_tile //= 2
    # keep >= 2 grid steps so the "parallel" axis can use both v7x TensorCores
    if N // row_tile < 2 and row_tile >= 64 and N % (row_tile // 2) == 0:
        row_tile //= 2
    assert N % row_tile == 0 and row_tile % 32 == 0, (N, row_tile)

    # stacked attention vectors: column 0 acts on h_i, column 1 on h_j
    a1 = a_w[0, :H]
    a2 = a_w[0, H:]
    a_stack = jnp.stack([a1, a2], axis=1).astype(jnp.float32)          # (H, 2)
    bias_row = jnp.stack([a_b.astype(jnp.float32)[0],
                          jnp.zeros((), jnp.float32)]).reshape(1, 2)   # (1, 2)

    cparams = pltpu.CompilerParams(
        dimension_semantics=("parallel",),
        vmem_limit_bytes=vlim)

    # --- 1) projection: single large-tile pass (MXU-friendly shapes) --------
    pt = N if N <= 512 else 512
    if N % pt != 0:
        pt = N
    wx, s = pl.pallas_call(
        proj_kernel,
        out_shape=(jax.ShapeDtypeStruct((N, H), jnp.float32),
                   jax.ShapeDtypeStruct((N, 2), jnp.float32)),
        grid=(N // pt,),
        in_specs=[pl.BlockSpec((pt, F), lambda i: (i, 0)),
                  pl.BlockSpec((F, H), lambda i: (0, 0)),
                  pl.BlockSpec((H, 2), lambda i: (0, 0)),
                  pl.BlockSpec((1, 2), lambda i: (0, 0))],
        out_specs=(pl.BlockSpec((pt, H), lambda i: (i, 0)),
                   pl.BlockSpec((pt, 2), lambda i: (i, 0))),
        compiler_params=cparams,
    )(x.astype(jnp.float32), w_fc_T.astype(jnp.float32), a_stack, bias_row)

    # O(N) glue (tiny): lay the logit pieces out for the attention kernel.
    s1b = s[:, 0:1]                           # (N, 1), bias already folded in
    s2_row = s[:, 1].reshape(1, N)            # (1, N)

    mask_i8 = (mask != 0).astype(jnp.int8)    # exact 0/1, 1 B/elem HBM stream
    wx_in = wx.astype(jnp.bfloat16) if mxu_bf16 else wx

    wx_bytes = 2 if mxu_bf16 else 4
    cost = pl.CostEstimate(
        flops=2 * N * N * H + 8 * N * N,
        transcendentals=N * N,
        bytes_accessed=N * N + N * H * wx_bytes + N * H * 4 + 16 * N)

    # --- 2) attention + aggregation, tiled over the destination-row axis ----
    out, hsum, rmax = pl.pallas_call(
        attn_kernel,
        out_shape=(jax.ShapeDtypeStruct((N, H), jnp.float32),
                   jax.ShapeDtypeStruct((N, 1), jnp.float32),
                   jax.ShapeDtypeStruct((N, 1), jnp.float32)),
        grid=(N // row_tile,),
        in_specs=[pl.BlockSpec((row_tile, 1), lambda i: (i, 0)),
                  pl.BlockSpec((1, N), lambda i: (0, 0)),
                  pl.BlockSpec((row_tile, N), lambda i: (i, 0)),
                  pl.BlockSpec((N, H), lambda i: (0, 0))],     # resident W_x
        out_specs=(pl.BlockSpec((row_tile, H), lambda i: (i, 0)),
                   pl.BlockSpec((row_tile, 1), lambda i: (i, 0)),
                   pl.BlockSpec((row_tile, 1), lambda i: (i, 0))),
        compiler_params=cparams,
        cost_estimate=cost,
    )(s1b, s2_row, mask_i8, wx_in)

    # --- 3) per-edge alpha from the softmax stats: O(E), no dense (N,N) -----
    # TODO(synk): move this gather in-kernel via scalar-prefetched CSR row
    # offsets (pltpu.PrefetchScalarGridSpec) to also avoid this O(E) XLA pass.
    s1v = s[:, 0]
    s2v = s[:, 1]
    e_edge = s1v[src] + s2v[dst]
    e_edge = jnp.where(e_edge > 0, e_edge, NEG_SLOPE * e_edge)
    alpha_edges = jnp.exp(e_edge - rmax[src, 0]) / hsum[src, 0]
    return out, alpha_edges


# ----------------------------------------------------------------------------
# Plain-JAX reference mirroring the PyTorch forward exactly
# ----------------------------------------------------------------------------
def gat_layer_ref(x, w_fc_T, a_w, a_b, src, dst):
    N = x.shape[0]
    H = w_fc_T.shape[1]
    wx = x @ w_fc_T
    cat = jnp.concatenate([wx[src], wx[dst]], axis=1)      # (E, 2H)
    e = cat @ a_w.T + a_b                                   # (E, 1)
    e = jnp.where(e > 0, e, NEG_SLOPE * e)
    h = jnp.exp(e[:, 0])
    h_sum = jnp.zeros((N,), jnp.float32).at[src].add(h)     # scatter_add over src
    alpha = h / h_sum[src]
    out = jnp.zeros((N, H), jnp.float32).at[src].add(alpha[:, None] * wx[dst])
    return out, alpha


if __name__ == "__main__":
    N, F, H = 256, 64, 128    # n_nodes, n_feat, n_hidden (H=128 -> lane-dense out)

    key = jax.random.PRNGKey(0)
    k_x, k_w, k_a, k_b, k_adj = jax.random.split(key, 5)

    # deterministic parameters (shapes from the module __init__)
    x = jax.random.normal(k_x, (N, F), jnp.float32)
    w_fc = 0.1 * jax.random.normal(k_w, (H, F), jnp.float32)     # fc.weight
    w_fc_T = w_fc.T                                              # (F, H)
    a_w = 0.1 * jax.random.normal(k_a, (1, 2 * H), jnp.float32)  # a.weight
    a_b = 0.1 * jax.random.normal(k_b, (1,), jnp.float32)        # a.bias

    # deterministic sparse adjacency with self-loops (every node is a source,
    # matching the torch.unique / scatter_add assumption)
    A = jax.random.uniform(k_adj, (N, N)) < 0.08
    A = A | A.T | jnp.eye(N, dtype=bool)
    A_np = np.asarray(A)
    src_np, dst_np = np.nonzero(A_np)       # row-major order == coalesce order
    src = jnp.asarray(src_np, jnp.int32)
    dst = jnp.asarray(dst_np, jnp.int32)

    out_ref_v, alpha_ref_v = gat_layer_ref(x, w_fc_T, a_w, a_b, src, dst)

    # default path: bf16 MXU operands for the aggregation (all generations);
    # alpha stays f32-exact (softmax stats are computed in f32)
    out, alpha = gat_layer_pallas(x, w_fc_T, a_w, a_b, A, src, dst)
    out = jax.block_until_ready(out)
    alpha = jax.block_until_ready(alpha)
    np.testing.assert_allclose(np.asarray(alpha), np.asarray(alpha_ref_v),
                               rtol=1e-4, atol=1e-5)
    np.testing.assert_allclose(np.asarray(out), np.asarray(out_ref_v),
                               rtol=2e-2, atol=2e-2)

    # exact f32 MXU path -- tight check on both outputs
    out_f32, alpha_f32 = gat_layer_pallas(x, w_fc_T, a_w, a_b, A, src, dst,
                                          mxu_bf16=False)
    out_f32 = jax.block_until_ready(out_f32)
    alpha_f32 = jax.block_until_ready(alpha_f32)
    np.testing.assert_allclose(np.asarray(out_f32), np.asarray(out_ref_v),
                               rtol=1e-4, atol=1e-5)
    np.testing.assert_allclose(np.asarray(alpha_f32), np.asarray(alpha_ref_v),
                               rtol=1e-4, atol=1e-5)

    print("KERNEL_OK")
</pallas_src>

<mosaic_0001>
module attributes {stable_mosaic.version = 11 : i64} {
  func.func @proj_kernel(%arg0: i32, %arg1: memref<256x64xf32, #tpu.memory_space<vmem>>, %arg2: memref<64x128xf32, #tpu.memory_space<vmem>>, %arg3: memref<128x2xf32, #tpu.memory_space<vmem>>, %arg4: memref<1x2xf32, #tpu.memory_space<vmem>>, %arg5: memref<256x128xf32, #tpu.memory_space<vmem>>, %arg6: memref<256x2xf32, #tpu.memory_space<vmem>>) attributes {dimension_semantics = [#tpu.dimension_semantics<parallel>], iteration_bounds = array<i64: 1>, scalar_prefetch = 0 : i64, scratch_operands = 0 : i64, tpu.core_type = #tpu.core_type<tc>, window_params = [{transform_indices = @transform_0, window_bounds = array<i64: 256, 64>}, {pipeline_mode = #tpu.pipeline_mode<synchronous>, transform_indices = @transform_1, window_bounds = array<i64: 64, 128>}, {pipeline_mode = #tpu.pipeline_mode<synchronous>, transform_indices = @transform_2, window_bounds = array<i64: 128, 2>}, {pipeline_mode = #tpu.pipeline_mode<synchronous>, transform_indices = @transform_3, window_bounds = array<i64: 1, 2>}, {transform_indices = @transform_4, window_bounds = array<i64: 256, 128>}, {transform_indices = @transform_5, window_bounds = array<i64: 256, 2>}]} {
    %c0 = arith.constant 0 : index
    %c0_0 = arith.constant 0 : index
    %0 = vector.load %arg1[%c0, %c0_0] : memref<256x64xf32, #tpu.memory_space<vmem>>, vector<256x64xf32>
    %c0_1 = arith.constant 0 : index
    %c0_2 = arith.constant 0 : index
    %1 = vector.load %arg2[%c0_1, %c0_2] : memref<64x128xf32, #tpu.memory_space<vmem>>, vector<64x128xf32>
    %cst = arith.constant dense<0.000000e+00> : vector<256x128xf32>
    %2 = tpu.matmul %0, %1, %cst {dimension_numbers = #tpu.dot_dimension_numbers<[1], [0], [0], [1], [0, 0, 1, 1], [], []>} : vector<256x64xf32>, vector<64x128xf32>, vector<256x128xf32> -> vector<256x128xf32>
    %c0_3 = arith.constant 0 : index
    %c0_4 = arith.constant 0 : index
    %3 = vector.load %arg5[%c0_3, %c0_4] : memref<256x128xf32, #tpu.memory_space<vmem>>, vector<256x128xf32>
    tpu.vector_store %arg5[%c0_3, %c0_4], %2 {strides = array<i32>} : memref<256x128xf32, #tpu.memory_space<vmem>>, vector<256x128xf32>,
    %c0_5 = arith.constant 0 : index
    %c0_6 = arith.constant 0 : index
    %4 = vector.load %arg3[%c0_5, %c0_6] : memref<128x2xf32, #tpu.memory_space<vmem>>, vector<128x2xf32>
    %cst_7 = arith.constant dense<0.000000e+00> : vector<256x2xf32>
    %5 = tpu.matmul %2, %4, %cst_7 {dimension_numbers = #tpu.dot_dimension_numbers<[1], [0], [0], [1], [0, 0, 1, 1], [], []>} : vector<256x128xf32>, vector<128x2xf32>, vector<256x2xf32> -> vector<256x2xf32>
    %c0_8 = arith.constant 0 : index
    %c0_9 = arith.constant 0 : index
    %6 = vector.load %arg4[%c0_8, %c0_9] : memref<1x2xf32, #tpu.memory_space<vmem>>, vector<1x2xf32>
    %7 = vector.broadcast %6 : vector<1x2xf32> to vector<256x2xf32>
    %8 = arith.addf %5, %7 : vector<256x2xf32>
    %c0_10 = arith.constant 0 : index
    %c0_11 = arith.constant 0 : index
    %9 = vector.load %arg6[%c0_10, %c0_11] : memref<256x2xf32, #tpu.memory_space<vmem>>, vector<256x2xf32>
    tpu.vector_store %arg6[%c0_10, %c0_11], %8 {strides = array<i32>} : memref<256x2xf32, #tpu.memory_space<vmem>>, vector<256x2xf32>,
    return
  }
  func.func @transform_0(%arg0: i32) -> (i32, i32) {
    %c0_i32 = arith.constant 0 : i32
    %c0_i32_0 = arith.constant 0 : i32
    return %arg0, %c0_i32 : i32, i32
  }
  func.func @transform_1(%arg0: i32) -> (i32, i32) {
    %c0_i32 = arith.constant 0 : i32
    %c0_i32_0 = arith.constant 0 : i32
    %c0_i32_1 = arith.constant 0 : i32
    return %c0_i32, %c0_i32_0 : i32, i32
  }
  func.func @transform_2(%arg0: i32) -> (i32, i32) {
    %c0_i32 = arith.constant 0 : i32
    %c0_i32_0 = arith.constant 0 : i32
    %c0_i32_1 = arith.constant 0 : i32
    return %c0_i32, %c0_i32_0 : i32, i32
  }
  func.func @transform_3(%arg0: i32) -> (i32, i32) {
    %c0_i32 = arith.constant 0 : i32
    %c0_i32_0 = arith.constant 0 : i32
    %c0_i32_1 = arith.constant 0 : i32
    return %c0_i32, %c0_i32_0 : i32, i32
  }
  func.func @transform_4(%arg0: i32) -> (i32, i32) {
    %c0_i32 = arith.constant 0 : i32
    %c0_i32_0 = arith.constant 0 : i32
    return %arg0, %c0_i32 : i32, i32
  }
  func.func @transform_5(%arg0: i32) -> (i32, i32) {
    %c0_i32 = arith.constant 0 : i32
    %c0_i32_0 = arith.constant 0 : i32
    return %arg0, %c0_i32 : i32, i32
  }
}

</mosaic_0001>

<llo_original>
// kernel: tpu_custom_call.1
$region0: #{tpu_custom_call.1}
  #allocation0 [shape = 'u32[]', space=smem, size = 0x4, offset = 0x4, fixed_abs, tag = 'smem constant byte address 0x4 - core index']
  #allocation1 [shape = 'u32[144,128]{1,0:T(1,128)}', space=vmem, size = 0x12000, scoped, tag = 'internal scratch']
  %s0 = inlined_call_operand.vmem [shape: f32[256,64], index: 0, kind: input, shape index: {}]
  %s1 = inlined_call_operand.vmem [shape: f32[64,128], index: 1, kind: input, shape index: {}]
  %s2 = inlined_call_operand.vmem [shape: f32[128,2], index: 2, kind: input, shape index: {}]
  %s3 = inlined_call_operand.vmem [shape: f32[1,2], index: 3, kind: input, shape index: {}]
  %s4 = inlined_call_operand.hbm [shape: f32[256,128], index: 4, kind: output, shape index: {0}]
  %s5 = inlined_call_operand.vmem [shape: f32[256,2], index: 5, kind: output, shape index: {1}]
  %6 = xla_tuple %s4, %s5
  %s7 = sld [smem:[#allocation0]]
  $region34: #{tpu_custom_call.1} parent=0
    _
  %s9 = ssub.s32 1, %s7
  %s10 = scalar_select 0, %s9, %s7
  $region1: #{tpu_custom_call.1} parent=0
    #allocation2 [shape = 'u8[131072]{0}', space=vmem, size = 0x20000, scoped, tag = 'output window, operand 0, single buffered']
    #allocation3 [shape = 's32[1]{0}', space=sflag, size = 0x4, scoped, tag = 'scoped memory for tpu_custom_call.1']
    %11 = vsyncpa [#allocation3], 0
    // Predicated region
    $region2: #{tpu_custom_call.1} parent=1 // pred_check
      _
    $region3: #{tpu_custom_call.1} parent=1 // pred_check_branch
      %13 = sbr.rel (0) target = $region5
    $region4: #{tpu_custom_call.1} parent=1 // pred_region
      _
    $region5: #{tpu_custom_call.1} parent=1 // pred_fallthru
      _
    // Predicated region
    $region6: #{tpu_custom_call.1} parent=1 // pred_check
      _
    $region7: #{tpu_custom_call.1} parent=1 // pred_check_branch
      %15 = sbr.rel (0) target = $region9
    $region8: #{tpu_custom_call.1} parent=1 // pred_region
      _
    $region9: #{tpu_custom_call.1} parent=1 // pred_fallthru
      _
    // Predicated region
    $region10: #{tpu_custom_call.1} parent=1 // pred_check
      _
    $region11: #{tpu_custom_call.1} parent=1 // pred_check_branch
      %17 = sbr.rel (0) target = $region13
    $region12: #{tpu_custom_call.1} parent=1 // pred_region
      _
    $region13: #{tpu_custom_call.1} parent=1 // pred_fallthru
      _
    // Predicated region
    $region14: #{tpu_custom_call.1} parent=1 // pred_check
      _
    $region15: #{tpu_custom_call.1} parent=1 // pred_check_branch
      %19 = sbr.rel (0) target = $region17
    $region16: #{tpu_custom_call.1} parent=1 // pred_region
      _
    $region17: #{tpu_custom_call.1} parent=1 // pred_fallthru
      _
    %v20 = vld [vmem:[%s0] sm:$0xff]
    %v21 = vld [vmem:[%s0 + $0x8] sm:$0xff]
    %v22 = vld [vmem:[%s0 + $0x10] sm:$0xff]
    %v23 = vld [vmem:[%s0 + $0x18] sm:$0xff]
    %v24 = vld [vmem:[%s0 + $0x20] sm:$0xff]
    %v25 = vld [vmem:[%s0 + $0x28] sm:$0xff]
    %v26 = vld [vmem:[%s0 + $0x30] sm:$0xff]
    %v27 = vld [vmem:[%s0 + $0x38] sm:$0xff]
    %v28 = vld [vmem:[%s0 + $0x40] sm:$0xff]
    %v29 = vld [vmem:[%s0 + $0x48] sm:$0xff]
    %v30 = vld [vmem:[%s0 + $0x50] sm:$0xff]
    %v31 = vld [vmem:[%s0 + $0x58] sm:$0xff]
    %v32 = vld [vmem:[%s0 + $0x60] sm:$0xff]
    %v33 = vld [vmem:[%s0 + $0x68] sm:$0xff]
    %v34 = vld [vmem:[%s0 + $0x70] sm:$0xff]
    %v35 = vld [vmem:[%s0 + $0x78] sm:$0xff]
    %v36 = vld [vmem:[%s0 + $0x80] sm:$0xff]
    %v37 = vld [vmem:[%s0 + $0x88] sm:$0xff]
    %v38 = vld [vmem:[%s0 + $0x90] sm:$0xff]
    %v39 = vld [vmem:[%s0 + $0x98] sm:$0xff]
    %v40 = vld [vmem:[%s0 + $0xa0] sm:$0xff]
    %v41 = vld [vmem:[%s0 + $0xa8] sm:$0xff]
    %v42 = vld [vmem:[%s0 + $0xb0] sm:$0xff]
    %v43 = vld [vmem:[%s0 + $0xb8] sm:$0xff]
    %v44 = vld [vmem:[%s0 + $0xc0] sm:$0xff]
    %v45 = vld [vmem:[%s0 + $0xc8] sm:$0xff]
    %v46 = vld [vmem:[%s0 + $0xd0] sm:$0xff]
    %v47 = vld [vmem:[%s0 + $0xd8] sm:$0xff]
    %v48 = vld [vmem:[%s0 + $0xe0] sm:$0xff]
    %v49 = vld [vmem:[%s0 + $0xe8] sm:$0xff]
    %v50 = vld [vmem:[%s0 + $0xf0] sm:$0xff]
    %v51 = vld [vmem:[%s0 + $0xf8] sm:$0xff]
    %v52 = vld [vmem:[%s1] sm:$0xff]
    %v53 = vld [vmem:[%s1 + $0x8] sm:$0xff]
    %v54 = vld [vmem:[%s1 + $0x10] sm:$0xff]
    %v55 = vld [vmem:[%s1 + $0x18] sm:$0xff]
    %v56 = vld [vmem:[%s1 + $0x20] sm:$0xff]
    %v57 = vld [vmem:[%s1 + $0x28] sm:$0xff]
    %v58 = vld [vmem:[%s1 + $0x30] sm:$0xff]
    %v59 = vld [vmem:[%s1 + $0x38] sm:$0xff]
    %vm60 = vcmask 523264
    %v62 = vsel %vm60, %v20, 0
    %v65 = vsel %vm60, %v21, 0
    %v68 = vsel %vm60, %v22, 0
    %v71 = vsel %vm60, %v23, 0
    %v74 = vsel %vm60, %v24, 0
    %v77 = vsel %vm60, %v25, 0
    %v80 = vsel %vm60, %v26, 0
    %v83 = vsel %vm60, %v27, 0
    %v86 = vsel %vm60, %v28, 0
    %v89 = vsel %vm60, %v29, 0
    %v92 = vsel %vm60, %v30, 0
    %v95 = vsel %vm60, %v31, 0
    %v98 = vsel %vm60, %v32, 0
    %v101 = vsel %vm60, %v33, 0
    %v104 = vsel %vm60, %v34, 0
    %v107 = vsel %vm60, %v35, 0
    %v110 = vsel %vm60, %v36, 0
    %v113 = vsel %vm60, %v37, 0
    %v116 = vsel %vm60, %v38, 0
    %v119 = vsel %vm60, %v39, 0
    %v122 = vsel %vm60, %v40, 0
    %v125 = vsel %vm60, %v41, 0
    %v128 = vsel %vm60, %v42, 0
    %v131 = vsel %vm60, %v43, 0
    %v134 = vsel %vm60, %v44, 0
    %v137 = vsel %vm60, %v45, 0
    %v140 = vsel %vm60, %v46, 0
    %v143 = vsel %vm60, %v47, 0
    %v146 = vsel %vm60, %v48, 0
    %v149 = vsel %vm60, %v49, 0
    %v152 = vsel %vm60, %v50, 0
    %v155 = vsel %vm60, %v51, 0
    %157 = vmatprep.subr.mxu0 0.0
    %158 = vmatpush1.msra.mxu0 0.0
    %159 = vmatprep.subr.mxu0 0.0
    %160 = vmatpush1.msra.mxu0 0.0
    %161 = vmatprep.subr.mxu0 0.0
    %162 = vmatpush1.msra.mxu0 0.0
    %163 = vmatprep.subr.mxu0 0.0
    %164 = vmatpush1.msra.mxu0 0.0
    %165 = vmatprep.subr.mxu0 0.0
    %166 = vmatpush1.msra.mxu0 0.0
    %167 = vmatprep.subr.mxu0 0.0
    %168 = vmatpush1.msra.mxu0 0.0
    %169 = vmatprep.subr.mxu0 0.0
    %170 = vmatpush1.msra.mxu0 0.0
    %171 = vmatprep.subr.mxu0 0.0
    %172 = vmatpush1.msra.mxu0 0.0
    %173 = vmatprep.subr.mxu0 0.0
    %174 = vmatpush1.msra.mxu0 %v59
    %175 = vmatprep.subr.mxu0 0.0
    %176 = vmatpush1.msra.mxu0 %v58
    %177 = vmatprep.subr.mxu0 0.0
    %178 = vmatpush1.msra.mxu0 %v57
    %179 = vmatprep.subr.mxu0 0.0
    %180 = vmatpush1.msra.mxu0 %v56
    %181 = vmatprep.subr.mxu0 0.0
    %182 = vmatpush1.msra.mxu0 %v55
    %183 = vmatprep.subr.mxu0 0.0
    %184 = vmatpush1.msra.mxu0 %v54
    %185 = vmatprep.subr.mxu0 0.0
    %186 = vmatpush1.msra.mxu0 %v53
    %187 = vmatprep.subr.mxu0 0.0
    %188 = vmatpush1.msra.mxu0 %v52
    %189 = vmatprep.subr.mxu0 0.0
    %190 = vmatpush2.msra.mxu0 0.0
    %191 = vmatprep.subr.mxu0 0.0
    %192 = vmatpush2.msra.mxu0 0.0
    %193 = vmatprep.subr.mxu0 0.0
    %194 = vmatpush2.msra.mxu0 0.0
    %195 = vmatprep.subr.mxu0 0.0
    %196 = vmatpush2.msra.mxu0 0.0
    %197 = vmatprep.subr.mxu0 0.0
    %198 = vmatpush2.msra.mxu0 0.0
    %199 = vmatprep.subr.mxu0 0.0
    %200 = vmatpush2.msra.mxu0 0.0
    %201 = vmatprep.subr.mxu0 0.0
    %202 = vmatpush2.msra.mxu0 0.0
    %203 = vmatprep.subr.mxu0 0.0
    %204 = vmatpush2.msra.mxu0 0.0
    %205 = vmatprep.subr.mxu0 0.0
    %206 = vmatpush2.msra.mxu0 0.0
    %207 = vmatprep.subr.mxu0 0.0
    %208 = vmatpush2.msra.mxu0 0.0
    %209 = vmatprep.subr.mxu0 0.0
    %210 = vmatpush2.msra.mxu0 0.0
    %211 = vmatprep.subr.mxu0 0.0
    %212 = vmatpush2.msra.mxu0 0.0
    %213 = vmatprep.subr.mxu0 0.0
    %214 = vmatpush2.msra.mxu0 0.0
    %215 = vmatprep.subr.mxu0 0.0
    %216 = vmatpush2.msra.mxu0 0.0
    %217 = vmatprep.subr.mxu0 0.0
    %218 = vmatpush2.msra.mxu0 0.0
    %219 = vmatprep.subr.mxu0 0.0
    %220 = vmatpush2.msra.mxu0 0.0
    %221 = vmatprep.mubr.f32.mxu0 0.0
    %222 = vmatmul.mubr.f32.gmra.mxu0 %v62
    %v223 = vpop.f32.mrf.mxu0
    %v224 = vadd.f32 0.0, %v223
    %v225 = vpop.f32.mrf.mxu0
    %226 = vmatprep.mubr.f32.mxu0 0.0
    %227 = vmatmul.mubr.f32.gmra.mxu0 %v65
    %v228 = vpop.f32.mrf.mxu0
    %v229 = vadd.f32 0.0, %v228
    %v230 = vpop.f32.mrf.mxu0
    %231 = vmatprep.mubr.f32.mxu0 0.0
    %232 = vmatmul.mubr.f32.gmra.mxu0 %v68
    %v233 = vpop.f32.mrf.mxu0
    %v234 = vadd.f32 0.0, %v233
    %v235 = vpop.f32.mrf.mxu0
    %236 = vmatprep.mubr.f32.mxu0 0.0
    %237 = vmatmul.mubr.f32.gmra.mxu0 %v71
    %v238 = vpop.f32.mrf.mxu0
    %v239 = vadd.f32 0.0, %v238
    %v240 = vpop.f32.mrf.mxu0
    %241 = vmatprep.mubr.f32.mxu0 0.0
    %242 = vmatmul.mubr.f32.gmra.mxu0 %v74
    %v243 = vpop.f32.mrf.mxu0
    %v244 = vadd.f32 0.0, %v243
    %v245 = vpop.f32.mrf.mxu0
    %246 = vmatprep.mubr.f32.mxu0 0.0
    %247 = vmatmul.mubr.f32.gmra.mxu0 %v77
    %v248 = vpop.f32.mrf.mxu0
    %v249 = vadd.f32 0.0, %v248
    %v250 = vpop.f32.mrf.mxu0
    %251 = vmatprep.mubr.f32.mxu0 0.0
    %252 = vmatmul.mubr.f32.gmra.mxu0 %v80
    %v253 = vpop.f32.mrf.mxu0
    %v254 = vadd.f32 0.0, %v253
    %v255 = vpop.f32.mrf.mxu0
    %256 = vmatprep.mubr.f32.mxu0 0.0
    %257 = vmatmul.mubr.f32.gmra.mxu0 %v83
    %v258 = vpop.f32.mrf.mxu0
    %v259 = vadd.f32 0.0, %v258
    %v260 = vpop.f32.mrf.mxu0
    %261 = vmatprep.mubr.f32.mxu0 0.0
    %262 = vmatmul.mubr.f32.gmra.mxu0 %v86
    %v263 = vpop.f32.mrf.mxu0
    %v264 = vadd.f32 0.0, %v263
    %v265 = vpop.f32.mrf.mxu0
    %266 = vmatprep.mubr.f32.mxu0 0.0
    %267 = vmatmul.mubr.f32.gmra.mxu0 %v89
    %v268 = vpop.f32.mrf.mxu0
    %v269 = vadd.f32 0.0, %v268
    %v270 = vpop.f32.mrf.mxu0
    %271 = vmatprep.mubr.f32.mxu0 0.0
    %272 = vmatmul.mubr.f32.gmra.mxu0 %v92
    %v273 = vpop.f32.mrf.mxu0
    %v274 = vadd.f32 0.0, %v273
    %v275 = vpop.f32.mrf.mxu0
    %276 = vmatprep.mubr.f32.mxu0 0.0
    %277 = vmatmul.mubr.f32.gmra.mxu0 %v95
    %v278 = vpop.f32.mrf.mxu0
    %v279 = vadd.f32 0.0, %v278
    %v280 = vpop.f32.mrf.mxu0
    %281 = vmatprep.mubr.f32.mxu0 0.0
    %282 = vmatmul.mubr.f32.gmra.mxu0 %v98
    %v283 = vpop.f32.mrf.mxu0
    %v284 = vadd.f32 0.0, %v283
    %v285 = vpop.f32.mrf.mxu0
    %286 = vmatprep.mubr.f32.mxu0 0.0
    %287 = vmatmul.mubr.f32.gmra.mxu0 %v101
    %v288 = vpop.f32.mrf.mxu0
    %v289 = vadd.f32 0.0, %v288
    %v290 = vpop.f32.mrf.mxu0
    %291 = vmatprep.mubr.f32.mxu0 0.0
    %292 = vmatmul.mubr.f32.gmra.mxu0 %v104
    %v293 = vpop.f32.mrf.mxu0
    %v294 = vadd.f32 0.0, %v293
    %v295 = vpop.f32.mrf.mxu0
    %296 = vmatprep.mubr.f32.mxu0 0.0
    %297 = vmatmul.mubr.f32.gmra.mxu0 %v107
    %v298 = vpop.f32.mrf.mxu0
    %v299 = vadd.f32 0.0, %v298
    %v300 = vpop.f32.mrf.mxu0
    %301 = vmatprep.mubr.f32.mxu0 0.0
    %302 = vmatmul.mubr.f32.gmra.mxu0 %v110
    %v303 = vpop.f32.mrf.mxu0
    %v304 = vadd.f32 0.0, %v303
    %v305 = vpop.f32.mrf.mxu0
    %306 = vmatprep.mubr.f32.mxu0 0.0
    %307 = vmatmul.mubr.f32.gmra.mxu0 %v113
    %v308 = vpop.f32.mrf.mxu0
    %v309 = vadd.f32 0.0, %v308
    %v310 = vpop.f32.mrf.mxu0
    %311 = vmatprep.mubr.f32.mxu0 0.0
    %312 = vmatmul.mubr.f32.gmra.mxu0 %v116
    %v313 = vpop.f32.mrf.mxu0
    %v314 = vadd.f32 0.0, %v313
    %v315 = vpop.f32.mrf.mxu0
    %316 = vmatprep.mubr.f32.mxu0 0.0
    %317 = vmatmul.mubr.f32.gmra.mxu0 %v119
    %v318 = vpop.f32.mrf.mxu0
    %v319 = vadd.f32 0.0, %v318
    %v320 = vpop.f32.mrf.mxu0
    %321 = vmatprep.mubr.f32.mxu0 0.0
    %322 = vmatmul.mubr.f32.gmra.mxu0 %v122
    %v323 = vpop.f32.mrf.mxu0
    %v324 = vadd.f32 0.0, %v323
    %v325 = vpop.f32.mrf.mxu0
    %326 = vmatprep.mubr.f32.mxu0 0.0
    %327 = vmatmul.mubr.f32.gmra.mxu0 %v125
    %v328 = vpop.f32.mrf.mxu0
    %v329 = vadd.f32 0.0, %v328
    %v330 = vpop.f32.mrf.mxu0
    %331 = vmatprep.mubr.f32.mxu0 0.0
    %332 = vmatmul.mubr.f32.gmra.mxu0 %v128
    %v333 = vpop.f32.mrf.mxu0
    %v334 = vadd.f32 0.0, %v333
    %v335 = vpop.f32.mrf.mxu0
    %336 = vmatprep.mubr.f32.mxu0 0.0
    %337 = vmatmul.mubr.f32.gmra.mxu0 %v131
    %v338 = vpop.f32.mrf.mxu0
    %v339 = vadd.f32 0.0, %v338
    %v340 = vpop.f32.mrf.mxu0
    %341 = vmatprep.mubr.f32.mxu0 0.0
    %342 = vmatmul.mubr.f32.gmra.mxu0 %v134
    %v343 = vpop.f32.mrf.mxu0
    %v344 = vadd.f32 0.0, %v343
    %v345 = vpop.f32.mrf.mxu0
    %346 = vmatprep.mubr.f32.mxu0 0.0
    %347 = vmatmul.mubr.f32.gmra.mxu0 %v137
    %v348 = vpop.f32.mrf.mxu0
    %v349 = vadd.f32 0.0, %v348
    %v350 = vpop.f32.mrf.mxu0
    %351 = vmatprep.mubr.f32.mxu0 0.0
    %352 = vmatmul.mubr.f32.gmra.mxu0 %v140
    %v353 = vpop.f32.mrf.mxu0
    %v354 = vadd.f32 0.0, %v353
    %v355 = vpop.f32.mrf.mxu0
    %356 = vmatprep.mubr.f32.mxu0 0.0
    %357 = vmatmul.mubr.f32.gmra.mxu0 %v143
    %v358 = vpop.f32.mrf.mxu0
    %v359 = vadd.f32 0.0, %v358
    %v360 = vpop.f32.mrf.mxu0
    %361 = vmatprep.mubr.f32.mxu0 0.0
    %362 = vmatmul.mubr.f32.gmra.mxu0 %v146
    %v363 = vpop.f32.mrf.mxu0
    %v364 = vadd.f32 0.0, %v363
    %v365 = vpop.f32.mrf.mxu0
    %366 = vmatprep.mubr.f32.mxu0 0.0
    %367 = vmatmul.mubr.f32.gmra.mxu0 %v149
    %v368 = vpop.f32.mrf.mxu0
    %v369 = vadd.f32 0.0, %v368
    %v370 = vpop.f32.mrf.mxu0
    %371 = vmatprep.mubr.f32.mxu0 0.0
    %372 = vmatmul.mubr.f32.gmra.mxu0 %v152
    %v373 = vpop.f32.mrf.mxu0
    %v374 = vadd.f32 0.0, %v373
    %v375 = vpop.f32.mrf.mxu0
    %376 = vmatprep.mubr.f32.mxu0 0.0
    %377 = vmatmul.mubr.f32.gmra.mxu0 %v155
    %v378 = vpop.f32.mrf.mxu0
    %v379 = vadd.f32 0.0, %v378
    %v380 = vpop.f32.mrf.mxu0
    %381 = vdwg.mxu0
    %382 = vst [vmem:[#allocation2] sm:$0xff] %v224
    %383 = vst [vmem:[#allocation2 + $0x8] sm:$0xff] %v229
    %384 = vst [vmem:[#allocation2 + $0x10] sm:$0xff] %v234
    %385 = vst [vmem:[#allocation2 + $0x18] sm:$0xff] %v239
    %386 = vst [vmem:[#allocation2 + $0x20] sm:$0xff] %v244
    %387 = vst [vmem:[#allocation2 + $0x28] sm:$0xff] %v249
    %388 = vst [vmem:[#allocation2 + $0x30] sm:$0xff] %v254
    %389 = vst [vmem:[#allocation2 + $0x38] sm:$0xff] %v259
    %390 = vst [vmem:[#allocation2 + $0x40] sm:$0xff] %v264
    %391 = vst [vmem:[#allocation2 + $0x48] sm:$0xff] %v269
    %392 = vst [vmem:[#allocation2 + $0x50] sm:$0xff] %v274
    %393 = vst [vmem:[#allocation2 + $0x58] sm:$0xff] %v279
    %394 = vst [vmem:[#allocation2 + $0x60] sm:$0xff] %v284
    %395 = vst [vmem:[#allocation2 + $0x68] sm:$0xff] %v289
    %396 = vst [vmem:[#allocation2 + $0x70] sm:$0xff] %v294
    %397 = vst [vmem:[#allocation2 + $0x78] sm:$0xff] %v299
    %398 = vst [vmem:[#allocation2 + $0x80] sm:$0xff] %v304
    %399 = vst [vmem:[#allocation2 + $0x88] sm:$0xff] %v309
    %400 = vst [vmem:[#allocation2 + $0x90] sm:$0xff] %v314
    %401 = vst [vmem:[#allocation2 + $0x98] sm:$0xff] %v319
    %402 = vst [vmem:[#allocation2 + $0xa0] sm:$0xff] %v324
    %403 = vst [vmem:[#allocation2 + $0xa8] sm:$0xff] %v329
    %404 = vst [vmem:[#allocation2 + $0xb0] sm:$0xff] %v334
    %405 = vst [vmem:[#allocation2 + $0xb8] sm:$0xff] %v339
    %406 = vst [vmem:[#allocation2 + $0xc0] sm:$0xff] %v344
    %407 = vst [vmem:[#allocation2 + $0xc8] sm:$0xff] %v349
    %408 = vst [vmem:[#allocation2 + $0xd0] sm:$0xff] %v354
    %409 = vst [vmem:[#allocation2 + $0xd8] sm:$0xff] %v359
    %410 = vst [vmem:[#allocation2 + $0xe0] sm:$0xff] %v364
    %411 = vst [vmem:[#allocation2 + $0xe8] sm:$0xff] %v369
    %412 = vst [vmem:[#allocation2 + $0xf0] sm:$0xff] %v374
    %413 = vst [vmem:[#allocation2 + $0xf8] sm:$0xff] %v379
    %v414 = vld [vmem:[%s2] sm:$0xff]
    %v415 = vld [vmem:[%s2 + $0x8] sm:$0xff]
    %v416 = vld [vmem:[%s2 + $0x10] sm:$0xff]
    %v417 = vld [vmem:[%s2 + $0x18] sm:$0xff]
    %v418 = vld [vmem:[%s2 + $0x20] sm:$0xff]
    %v419 = vld [vmem:[%s2 + $0x28] sm:$0xff]
    %v420 = vld [vmem:[%s2 + $0x30] sm:$0xff]
    %v421 = vld [vmem:[%s2 + $0x38] sm:$0xff]
    %v422 = vld [vmem:[%s2 + $0x40] sm:$0xff]
    %v423 = vld [vmem:[%s2 + $0x48] sm:$0xff]
    %v424 = vld [vmem:[%s2 + $0x50] sm:$0xff]
    %v425 = vld [vmem:[%s2 + $0x58] sm:$0xff]
    %v426 = vld [vmem:[%s2 + $0x60] sm:$0xff]
    %v427 = vld [vmem:[%s2 + $0x68] sm:$0xff]
    %v428 = vld [vmem:[%s2 + $0x70] sm:$0xff]
    %v429 = vld [vmem:[%s2 + $0x78] sm:$0xff]
    %v430 = vld [vmem:[%s3] sm:$0x1]
    %v432 = vlaneseq
    %v433 = vshrl.u32 %v432, 7
    %v434 = vsub.s32 0, %v433
    %v435 = vrot.slane %v430, %v434
    %437 = vmatprep.subr.mxu0 0.0
    %438 = vmatpush1.msra.mxu0 %v429
    %439 = vmatprep.subr.mxu0 0.0
    %440 = vmatpush1.msra.mxu0 %v428
    %441 = vmatprep.subr.mxu0 0.0
    %442 = vmatpush1.msra.mxu0 %v427
    %443 = vmatprep.subr.mxu0 0.0
    %444 = vmatpush1.msra.mxu0 %v426
    %445 = vmatprep.subr.mxu0 0.0
    %446 = vmatpush1.msra.mxu0 %v425
    %447 = vmatprep.subr.mxu0 0.0
    %448 = vmatpush1.msra.mxu0 %v424
    %449 = vmatprep.subr.mxu0 0.0
    %450 = vmatpush1.msra.mxu0 %v423
    %451 = vmatprep.subr.mxu0 0.0
    %452 = vmatpush1.msra.mxu0 %v422
    %453 = vmatprep.subr.mxu0 0.0
    %454 = vmatpush1.msra.mxu0 %v421
    %455 = vmatprep.subr.mxu0 0.0
    %456 = vmatpush1.msra.mxu0 %v420
    %457 = vmatprep.subr.mxu0 0.0
    %458 = vmatpush1.msra.mxu0 %v419
    %459 = vmatprep.subr.mxu0 0.0
    %460 = vmatpush1.msra.mxu0 %v418
    %461 = vmatprep.subr.mxu0 0.0
    %462 = vmatpush1.msra.mxu0 %v417
    %463 = vmatprep.subr.mxu0 0.0
    %464 = vmatpush1.msra.mxu0 %v416
    %465 = vmatprep.subr.mxu0 0.0
    %466 = vmatpush1.msra.mxu0 %v415
    %467 = vmatprep.subr.mxu0 0.0
    %468 = vmatpush1.msra.mxu0 %v414
    %469 = vmatprep.subr.mxu0 0.0
    %470 = vmatpush2.msra.mxu0 0.0
    %471 = vmatprep.subr.mxu0 0.0
    %472 = vmatpush2.msra.mxu0 0.0
    %473 = vmatprep.subr.mxu0 0.0
    %474 = vmatpush2.msra.mxu0 0.0
    %475 = vmatprep.subr.mxu0 0.0
    %476 = vmatpush2.msra.mxu0 0.0
    %477 = vmatprep.subr.mxu0 0.0
    %478 = vmatpush2.msra.mxu0 0.0
    %479 = vmatprep.subr.mxu0 0.0
    %480 = vmatpush2.msra.mxu0 0.0
    %481 = vmatprep.subr.mxu0 0.0
    %482 = vmatpush2.msra.mxu0 0.0
    %483 = vmatprep.subr.mxu0 0.0
    %484 = vmatpush2.msra.mxu0 0.0
    %485 = vmatprep.subr.mxu0 0.0
    %486 = vmatpush2.msra.mxu0 0.0
    %487 = vmatprep.subr.mxu0 0.0
    %488 = vmatpush2.msra.mxu0 0.0
    %489 = vmatprep.subr.mxu0 0.0
    %490 = vmatpush2.msra.mxu0 0.0
    %491 = vmatprep.subr.mxu0 0.0
    %492 = vmatpush2.msra.mxu0 0.0
    %493 = vmatprep.subr.mxu0 0.0
    %494 = vmatpush2.msra.mxu0 0.0
    %495 = vmatprep.subr.mxu0 0.0
    %496 = vmatpush2.msra.mxu0 0.0
    %497 = vmatprep.subr.mxu0 0.0
    %498 = vmatpush2.msra.mxu0 0.0
    %499 = vmatprep.subr.mxu0 0.0
    %500 = vmatpush2.msra.mxu0 0.0
    %501 = vmatprep.mubr.f32.mxu0 0.0
    %502 = vmatmul.mubr.f32.gmra.mxu0 %v224
    %v503 = vpop.f32.mrf.mxu0
    %v504 = vadd.f32 %v435, %v503
    %v505 = vpop.f32.mrf.mxu0
    %506 = vmatprep.mubr.f32.mxu0 0.0
    %507 = vmatmul.mubr.f32.gmra.mxu0 %v229
    %v508 = vpop.f32.mrf.mxu0
    %v509 = vadd.f32 %v435, %v508
    %v510 = vpop.f32.mrf.mxu0
    %511 = vmatprep.mubr.f32.mxu0 0.0
    %512 = vmatmul.mubr.f32.gmra.mxu0 %v234
    %v513 = vpop.f32.mrf.mxu0
    %v514 = vadd.f32 %v435, %v513
    %v515 = vpop.f32.mrf.mxu0
    %516 = vmatprep.mubr.f32.mxu0 0.0
    %517 = vmatmul.mubr.f32.gmra.mxu0 %v239
    %v518 = vpop.f32.mrf.mxu0
    %v519 = vadd.f32 %v435, %v518
    %v520 = vpop.f32.mrf.mxu0
    %521 = vmatprep.mubr.f32.mxu0 0.0
    %522 = vmatmul.mubr.f32.gmra.mxu0 %v244
    %v523 = vpop.f32.mrf.mxu0
    %v524 = vadd.f32 %v435, %v523
    %v525 = vpop.f32.mrf.mxu0
    %526 = vmatprep.mubr.f32.mxu0 0.0
    %527 = vmatmul.mubr.f32.gmra.mxu0 %v249
    %v528 = vpop.f32.mrf.mxu0
    %v529 = vadd.f32 %v435, %v528
    %v530 = vpop.f32.mrf.mxu0
    %531 = vmatprep.mubr.f32.mxu0 0.0
    %532 = vmatmul.mubr.f32.gmra.mxu0 %v254
    %v533 = vpop.f32.mrf.mxu0
    %v534 = vadd.f32 %v435, %v533
    %v535 = vpop.f32.mrf.mxu0
    %536 = vmatprep.mubr.f32.mxu0 0.0
    %537 = vmatmul.mubr.f32.gmra.mxu0 %v259
    %v538 = vpop.f32.mrf.mxu0
    %v539 = vadd.f32 %v435, %v538
    %v540 = vpop.f32.mrf.mxu0
    %541 = vmatprep.mubr.f32.mxu0 0.0
    %542 = vmatmul.mubr.f32.gmra.mxu0 %v264
    %v543 = vpop.f32.mrf.mxu0
    %v544 = vadd.f32 %v435, %v543
    %v545 = vpop.f32.mrf.mxu0
    %546 = vmatprep.mubr.f32.mxu0 0.0
    %547 = vmatmul.mubr.f32.gmra.mxu0 %v269
    %v548 = vpop.f32.mrf.mxu0
    %v549 = vadd.f32 %v435, %v548
    %v550 = vpop.f32.mrf.mxu0
    %551 = vmatprep.mubr.f32.mxu0 0.0
    %552 = vmatmul.mubr.f32.gmra.mxu0 %v274
    %v553 = vpop.f32.mrf.mxu0
    %v554 = vadd.f32 %v435, %v553
    %v555 = vpop.f32.mrf.mxu0
    %556 = vmatprep.mubr.f32.mxu0 0.0
    %557 = vmatmul.mubr.f32.gmra.mxu0 %v279
    %v558 = vpop.f32.mrf.mxu0
    %v559 = vadd.f32 %v435, %v558
    %v560 = vpop.f32.mrf.mxu0
    %561 = vmatprep.mubr.f32.mxu0 0.0
    %562 = vmatmul.mubr.f32.gmra.mxu0 %v284
    %v563 = vpop.f32.mrf.mxu0
    %v564 = vadd.f32 %v435, %v563
    %v565 = vpop.f32.mrf.mxu0
    %566 = vmatprep.mubr.f32.mxu0 0.0
    %567 = vmatmul.mubr.f32.gmra.mxu0 %v289
    %v568 = vpop.f32.mrf.mxu0
    %v569 = vadd.f32 %v435, %v568
    %v570 = vpop.f32.mrf.mxu0
    %571 = vmatprep.mubr.f32.mxu0 0.0
    %572 = vmatmul.mubr.f32.gmra.mxu0 %v294
    %v573 = vpop.f32.mrf.mxu0
    %v574 = vadd.f32 %v435, %v573
    %v575 = vpop.f32.mrf.mxu0
    %576 = vmatprep.mubr.f32.mxu0 0.0
    %577 = vmatmul.mubr.f32.gmra.mxu0 %v299
    %v578 = vpop.f32.mrf.mxu0
    %v579 = vadd.f32 %v435, %v578
    %v580 = vpop.f32.mrf.mxu0
    %581 = vmatprep.mubr.f32.mxu0 0.0
    %582 = vmatmul.mubr.f32.gmra.mxu0 %v304
    %v583 = vpop.f32.mrf.mxu0
    %v584 = vadd.f32 %v435, %v583
    %v585 = vpop.f32.mrf.mxu0
    %586 = vmatprep.mubr.f32.mxu0 0.0
    %587 = vmatmul.mubr.f32.gmra.mxu0 %v309
    %v588 = vpop.f32.mrf.mxu0
    %v589 = vadd.f32 %v435, %v588
    %v590 = vpop.f32.mrf.mxu0
    %591 = vmatprep.mubr.f32.mxu0 0.0
    %592 = vmatmul.mubr.f32.gmra.mxu0 %v314
    %v593 = vpop.f32.mrf.mxu0
    %v594 = vadd.f32 %v435, %v593
    %v595 = vpop.f32.mrf.mxu0
    %596 = vmatprep.mubr.f32.mxu0 0.0
    %597 = vmatmul.mubr.f32.gmra.mxu0 %v319
    %v598 = vpop.f32.mrf.mxu0
    %v599 = vadd.f32 %v435, %v598
    %v600 = vpop.f32.mrf.mxu0
    %601 = vmatprep.mubr.f32.mxu0 0.0
    %602 = vmatmul.mubr.f32.gmra.mxu0 %v324
    %v603 = vpop.f32.mrf.mxu0
    %v604 = vadd.f32 %v435, %v603
    %v605 = vpop.f32.mrf.mxu0
    %606 = vmatprep.mubr.f32.mxu0 0.0
    %607 = vmatmul.mubr.f32.gmra.mxu0 %v329
    %v608 = vpop.f32.mrf.mxu0
    %v609 = vadd.f32 %v435, %v608
    %v610 = vpop.f32.mrf.mxu0
    %611 = vmatprep.mubr.f32.mxu0 0.0
    %612 = vmatmul.mubr.f32.gmra.mxu0 %v334
    %v613 = vpop.f32.mrf.mxu0
    %v614 = vadd.f32 %v435, %v613
    %v615 = vpop.f32.mrf.mxu0
    %616 = vmatprep.mubr.f32.mxu0 0.0
    %617 = vmatmul.mubr.f32.gmra.mxu0 %v339
    %v618 = vpop.f32.mrf.mxu0
    %v619 = vadd.f32 %v435, %v618
    %v620 = vpop.f32.mrf.mxu0
    %621 = vmatprep.mubr.f32.mxu0 0.0
    %622 = vmatmul.mubr.f32.gmra.mxu0 %v344
    %v623 = vpop.f32.mrf.mxu0
    %v624 = vadd.f32 %v435, %v623
    %v625 = vpop.f32.mrf.mxu0
    %626 = vmatprep.mubr.f32.mxu0 0.0
    %627 = vmatmul.mubr.f32.gmra.mxu0 %v349
    %v628 = vpop.f32.mrf.mxu0
    %v629 = vadd.f32 %v435, %v628
    %v630 = vpop.f32.mrf.mxu0
    %631 = vmatprep.mubr.f32.mxu0 0.0
    %632 = vmatmul.mubr.f32.gmra.mxu0 %v354
    %v633 = vpop.f32.mrf.mxu0
    %v634 = vadd.f32 %v435, %v633
    %v635 = vpop.f32.mrf.mxu0
    %636 = vmatprep.mubr.f32.mxu0 0.0
    %637 = vmatmul.mubr.f32.gmra.mxu0 %v359
    %v638 = vpop.f32.mrf.mxu0
    %v639 = vadd.f32 %v435, %v638
    %v640 = vpop.f32.mrf.mxu0
    %641 = vmatprep.mubr.f32.mxu0 0.0
    %642 = vmatmul.mubr.f32.gmra.mxu0 %v364
    %v643 = vpop.f32.mrf.mxu0
    %v644 = vadd.f32 %v435, %v643
    %v645 = vpop.f32.mrf.mxu0
    %646 = vmatprep.mubr.f32.mxu0 0.0
    %647 = vmatmul.mubr.f32.gmra.mxu0 %v369
    %v648 = vpop.f32.mrf.mxu0
    %v649 = vadd.f32 %v435, %v648
    %v650 = vpop.f32.mrf.mxu0
    %651 = vmatprep.mubr.f32.mxu0 0.0
    %652 = vmatmul.mubr.f32.gmra.mxu0 %v374
    %v653 = vpop.f32.mrf.mxu0
    %v654 = vadd.f32 %v435, %v653
    %v655 = vpop.f32.mrf.mxu0
    %656 = vmatprep.mubr.f32.mxu0 0.0
    %657 = vmatmul.mubr.f32.gmra.mxu0 %v379
    %v658 = vpop.f32.mrf.mxu0
    %v659 = vadd.f32 %v435, %v658
    %v660 = vpop.f32.mrf.mxu0
    %661 = vdwg.mxu0
    %vm662 = vcmask 15360
    %663 = vst.msk [vmem:[%s5] sm:$0xff] %vm662, %v504
    %664 = vst.msk [vmem:[%s5 + $0x8] sm:$0xff] %vm662, %v509
    %665 = vst.msk [vmem:[%s5 + $0x10] sm:$0xff] %vm662, %v514
    %666 = vst.msk [vmem:[%s5 + $0x18] sm:$0xff] %vm662, %v519
    %667 = vst.msk [vmem:[%s5 + $0x20] sm:$0xff] %vm662, %v524
    %668 = vst.msk [vmem:[%s5 + $0x28] sm:$0xff] %vm662, %v529
    %669 = vst.msk [vmem:[%s5 + $0x30] sm:$0xff] %vm662, %v534
    %670 = vst.msk [vmem:[%s5 + $0x38] sm:$0xff] %vm662, %v539
    %671 = vst.msk [vmem:[%s5 + $0x40] sm:$0xff] %vm662, %v544
    %672 = vst.msk [vmem:[%s5 + $0x48] sm:$0xff] %vm662, %v549
    %673 = vst.msk [vmem:[%s5 + $0x50] sm:$0xff] %vm662, %v554
    %674 = vst.msk [vmem:[%s5 + $0x58] sm:$0xff] %vm662, %v559
    %675 = vst.msk [vmem:[%s5 + $0x60] sm:$0xff] %vm662, %v564
    %676 = vst.msk [vmem:[%s5 + $0x68] sm:$0xff] %vm662, %v569
    %677 = vst.msk [vmem:[%s5 + $0x70] sm:$0xff] %vm662, %v574
    %678 = vst.msk [vmem:[%s5 + $0x78] sm:$0xff] %vm662, %v579
    %679 = vst.msk [vmem:[%s5 + $0x80] sm:$0xff] %vm662, %v584
    %680 = vst.msk [vmem:[%s5 + $0x88] sm:$0xff] %vm662, %v589
    %681 = vst.msk [vmem:[%s5 + $0x90] sm:$0xff] %vm662, %v594
    %682 = vst.msk [vmem:[%s5 + $0x98] sm:$0xff] %vm662, %v599
    %683 = vst.msk [vmem:[%s5 + $0xa0] sm:$0xff] %vm662, %v604
    %684 = vst.msk [vmem:[%s5 + $0xa8] sm:$0xff] %vm662, %v609
    %685 = vst.msk [vmem:[%s5 + $0xb0] sm:$0xff] %vm662, %v614
    %686 = vst.msk [vmem:[%s5 + $0xb8] sm:$0xff] %vm662, %v619
    %687 = vst.msk [vmem:[%s5 + $0xc0] sm:$0xff] %vm662, %v624
    %688 = vst.msk [vmem:[%s5 + $0xc8] sm:$0xff] %vm662, %v629
    %689 = vst.msk [vmem:[%s5 + $0xd0] sm:$0xff] %vm662, %v634
    %690 = vst.msk [vmem:[%s5 + $0xd8] sm:$0xff] %vm662, %v639
    %691 = vst.msk [vmem:[%s5 + $0xe0] sm:$0xff] %vm662, %v644
    %692 = vst.msk [vmem:[%s5 + $0xe8] sm:$0xff] %vm662, %v649
    %693 = vst.msk [vmem:[%s5 + $0xf0] sm:$0xff] %vm662, %v654
    %694 = vst.msk [vmem:[%s5 + $0xf8] sm:$0xff] %vm662, %v659
    // Predicated region
    $region18: #{tpu_custom_call.1} parent=1 // pred_check
      _
    $region19: #{tpu_custom_call.1} parent=1 // pred_check_branch
      %696 = sbr.rel (0) target = $region21
    $region20: #{tpu_custom_call.1} parent=1 // pred_region
      %s698 = ssub.s32 4096, 4096
      %699 = vsyncadd [#allocation3], %s698
      %s700 = sshll.u32 [#allocation2], 4
      %s701 = int_to_ptr.vmem [resolvable:$true] %s700
      %706 = dma.vmem_to_hbm [thread:$0]  %s701, 4096, %s4, [#allocation3], 128, 128, 8
    $region21: #{tpu_custom_call.1} parent=1 // pred_fallthru
      _
    // Predicated region
    $region22: #{tpu_custom_call.1} parent=1 // pred_check
      _
    $region23: #{tpu_custom_call.1} parent=1 // pred_check_branch
      %708 = sbr.rel (0) target = $region25
    $region24: #{tpu_custom_call.1} parent=1 // pred_region
      _
    $region25: #{tpu_custom_call.1} parent=1 // pred_fallthru
      _
    // Predicated region
    $region26: #{tpu_custom_call.1} parent=1 // pred_check
      _
    $region27: #{tpu_custom_call.1} parent=1 // pred_check_branch
      %710 = sbr.rel (0) target = $region29
    $region28: #{tpu_custom_call.1} parent=1 // pred_region
      %711 = dma.done [#allocation3], 4096
    $region29: #{tpu_custom_call.1} parent=1 // pred_fallthru
      _
    // Predicated region
    $region30: #{tpu_custom_call.1} parent=1 // pred_check
      _
    $region31: #{tpu_custom_call.1} parent=1 // pred_check_branch
      %713 = sbr.rel (0) target = $region33
    $region32: #{tpu_custom_call.1} parent=1 // pred_region
      _
    $region33: #{tpu_custom_call.1} parent=1 // pred_fallthru
      _
    %714 = vsyncpa [#allocation3], 1

</llo_original>
